<compile_context>
chip_gen: v7x
topology: tpu7x:2x2x1
jax: 0.10.0
libtpu: 0.0.40
codegen_flags: <defaults>
</compile_context>

<pallas_src>
import functools
import math

import jax
import jax.numpy as jnp
from jax.experimental import pallas as pl
from jax.experimental.pallas import tpu as pltpu


def _gdice_kernel(x_ref, gt_ref, out_ref, sum_y_ref, sum_p_ref, inter_ref,
                  *, smooth, w_eps, hw, needs_mask):
    t = pl.program_id(1)
    nt = pl.num_programs(1)

    @pl.when(t == 0)
    def _():
        sum_y_ref[...] = jnp.zeros_like(sum_y_ref)
        sum_p_ref[...] = jnp.zeros_like(sum_p_ref)
        inter_ref[...] = jnp.zeros_like(inter_ref)

    x = x_ref[...].astype(jnp.float32)        # (C, S, 128) logits, f32 compute
    labels = gt_ref[...].astype(jnp.int32)    # (S, 128) class labels
    C, S, L = x.shape

    if needs_mask:
        # Flat pixel index of every element of this tile; anything >= HW is
        # either lane padding or an out-of-bounds ragged-tile row.
        row = jax.lax.broadcasted_iota(jnp.int32, (S, L), 0)
        lane = jax.lax.broadcasted_iota(jnp.int32, (S, L), 1)
        valid = (t * S + row) * L + lane < hw            # (S, L) bool
        x = jnp.where(valid, x, 0.0)                     # mask garbage pre-exp
    else:
        valid = None

    # Softmax over the channel (leading, untiled) axis: elementwise VALU only.
    m = jnp.max(x, axis=0)                               # (S, L)
    e = jnp.exp(x - m)                                   # (C, S, L)
    inv = pl.reciprocal(jnp.sum(e, axis=0), approx=True)  # one EUP vrcp / pixel
    p = e * inv                                          # (C, S, L)
    if needs_mask:
        p = jnp.where(valid, p, 0.0)

    # Per-class partial sums, accumulated lane-dense into (C, 128) scratch.
    for c in range(C):
        mask_c = labels == c                             # (S, L) bool one-hot
        if needs_mask:
            mask_c = jnp.logical_and(mask_c, valid)
        pc = p[c]                                        # (S, L)
        sum_y_ref[c, :] += jnp.sum(mask_c.astype(jnp.float32), axis=0)
        sum_p_ref[c, :] += jnp.sum(pc, axis=0)
        inter_ref[c, :] += jnp.sum(jnp.where(mask_c, pc, 0.0), axis=0)

    @pl.when(t == nt - 1)
    def _():
        # Cross-lane reductions happen only once per batch element, here.
        sy = jnp.sum(sum_y_ref[...], axis=1, keepdims=True)   # (C, 1)
        sp = jnp.sum(sum_p_ref[...], axis=1, keepdims=True)
        si = jnp.sum(inter_ref[...], axis=1, keepdims=True)
        wc = 1.0 / ((sy + w_eps) * (sy + w_eps))               # GDL class weights
        intersection = jnp.sum(wc * si)
        union = jnp.sum(wc * (sp + sy))
        divided = 1.0 - 2.0 * (intersection + smooth) / (union + smooth)
        out_ref[...] = jnp.full(out_ref.shape, divided, dtype=out_ref.dtype)


def _round_up(x, m):
    return ((x + m - 1) // m) * m


def gdice_loss(net_output, gt, *, smooth=1e-5, tile_rows=None):
    """net_output: (B, C, *spatial) float logits (any float dtype, bf16 ok);
       gt: (B, *spatial) or (B, 1, *spatial) integer class labels."""
    B, C = net_output.shape[0], net_output.shape[1]
    HW = math.prod(net_output.shape[2:])
    if gt.shape == net_output.shape:
        # TODO(synk): dense one-hot gt (same shape as net_output) branch of the
        # PyTorch forward is not handled here.
        raise NotImplementedError("one-hot gt input not supported")

    x = net_output.reshape(B, C, HW)          # keep caller dtype over HBM
    g = gt.reshape(B, HW)
    if g.dtype not in (jnp.int8, jnp.uint8, jnp.int32):
        g = g.astype(jnp.int32)               # keep small int dtypes as-is

    # Pad only to a lane multiple (128) when required for the free reshape;
    # padded pixels are masked in-kernel (no full re-tiling pad of the logits).
    HW_pad = _round_up(HW, 128)
    if HW_pad != HW:
        x = jnp.pad(x, ((0, 0), (0, 0), (0, HW_pad - HW)))
        g = jnp.pad(g, ((0, 0), (0, HW_pad - HW)))
    R = HW_pad // 128
    x = x.reshape(B, C, R, 128)
    g = g.reshape(B, R, 128)

    # Tile rows: keep the double-buffered (logits + labels) working set ~24 MiB.
    bytes_per_row = 128 * (C * jnp.dtype(x.dtype).itemsize
                           + jnp.dtype(g.dtype).itemsize)
    if tile_rows is None:
        tile_rows = min(4096, max(8, ((12 * 1024 * 1024) // bytes_per_row) // 8 * 8))
    S = min(R, int(tile_rows))
    if S < R:
        S = max(8, (S // 8) * 8)              # sublane-dim block constraint
    num_tiles = pl.cdiv(R, S)
    needs_mask = (num_tiles * S * 128) != HW  # ragged last tile and/or lane pad

    out = pl.pallas_call(
        functools.partial(_gdice_kernel, smooth=float(smooth), w_eps=1e-10,
                          hw=HW, needs_mask=needs_mask),
        out_shape=jax.ShapeDtypeStruct((B, 1, 128), jnp.float32),
        grid_spec=pltpu.PrefetchScalarGridSpec(
            num_scalar_prefetch=0,
            grid=(B, num_tiles),
            in_specs=[
                pl.BlockSpec((pl.Squeezed(), C, S, 128), lambda b, t: (b, 0, t, 0)),
                pl.BlockSpec((pl.Squeezed(), S, 128), lambda b, t: (b, t, 0)),
            ],
            out_specs=pl.BlockSpec((pl.Squeezed(), 1, 128), lambda b, t: (b, 0, 0)),
            scratch_shapes=[
                pltpu.VMEM((C, 128), jnp.float32),   # sum(y_onehot)    per class
                pltpu.VMEM((C, 128), jnp.float32),   # sum(softmax)     per class
                pltpu.VMEM((C, 128), jnp.float32),   # sum(softmax * y) per class
            ],
        ),
        compiler_params=pltpu.CompilerParams(
            # batch axis parallel (megacore); the spatial-tile axis carries the
            # accumulators so it must stay "arbitrary".
            dimension_semantics=("parallel", "arbitrary"),
            vmem_limit_bytes=48 * 1024 * 1024,
        ),
    )(x, g)
    # per-batch losses live in lane 0 of each batch row; mean over batch in JAX.
    return jnp.mean(out[:, 0, 0])


def _gdice_ref(net_output, gt, *, smooth=1e-5):
    """Pure-JAX reference mirroring the PyTorch forward (softmax nonlin)."""
    C = net_output.shape[1]
    axes = tuple(range(2, net_output.ndim))
    if gt.ndim == net_output.ndim:
        gt = gt.reshape(gt.shape[0], *gt.shape[2:])
    y_onehot = jax.nn.one_hot(gt, C, axis=1, dtype=jnp.float32)
    softmax_output = jax.nn.softmax(net_output.astype(jnp.float32), axis=1)
    sum_y = jnp.sum(y_onehot, axes)
    w = 1.0 / (sum_y + 1e-10) ** 2
    intersection = w * jnp.sum(softmax_output * y_onehot, axes)
    union = w * (jnp.sum(softmax_output, axes) + sum_y)
    divided = 1.0 - 2.0 * (jnp.sum(intersection, axis=1) + smooth) / (
        jnp.sum(union, axis=1) + smooth)
    return jnp.mean(divided)


if __name__ == "__main__":
    key = jax.random.PRNGKey(0)
    k1, k2, k3, k4, k5, k6, k7 = jax.random.split(key, 7)
    # approx reciprocal in the kernel -> slightly looser tolerance than 1e-5
    RTOL, ATOL = 2e-3, 2e-3

    # 1) base case: f32 logits, HW multiple of 128, single tile per batch
    B, C, H, W = 2, 4, 16, 16
    net = jax.random.normal(k1, (B, C, H, W), dtype=jnp.float32)
    gt = jax.random.randint(k2, (B, H, W), 0, C, dtype=jnp.int32)
    ref = jax.block_until_ready(_gdice_ref(net, gt))
    loss = jax.block_until_ready(gdice_loss(net, gt))
    assert jnp.allclose(loss, ref, rtol=RTOL, atol=ATOL), (loss, ref)

    # 2) bf16 logits over HBM (kernel computes in f32)
    B2, C2, H2, W2 = 2, 4, 64, 64
    net2 = jax.random.normal(k3, (B2, C2, H2, W2), dtype=jnp.bfloat16)
    gt2 = jax.random.randint(k4, (B2, H2, W2), 0, C2, dtype=jnp.int32)
    ref2 = jax.block_until_ready(_gdice_ref(net2, gt2))
    loss2 = jax.block_until_ready(gdice_loss(net2, gt2))
    assert jnp.allclose(loss2, ref2, rtol=RTOL, atol=ATOL), (loss2, ref2)

    # 3) ragged last spatial tile (R=12 rows, 8-row tiles -> OOB rows masked)
    net3 = jax.random.normal(k5, (1, 4, 48, 32), dtype=jnp.float32)
    gt3 = jax.random.randint(k6, (1, 48, 32), 0, 4, dtype=jnp.int32)
    ref3 = jax.block_until_ready(_gdice_ref(net3, gt3))
    loss3 = jax.block_until_ready(gdice_loss(net3, gt3, tile_rows=8))
    assert jnp.allclose(loss3, ref3, rtol=RTOL, atol=ATOL), (loss3, ref3)

    # 4) HW not a multiple of 128 (lane pad + mask), gt given as (B, 1, H, W)
    net4 = jax.random.normal(k7, (2, 3, 10, 10), dtype=jnp.float32)
    gt4 = jax.random.randint(k2, (2, 1, 10, 10), 0, 3, dtype=jnp.int32)
    ref4 = jax.block_until_ready(_gdice_ref(net4, gt4))
    loss4 = jax.block_until_ready(gdice_loss(net4, gt4))
    assert jnp.allclose(loss4, ref4, rtol=RTOL, atol=ATOL), (loss4, ref4)

    print("KERNEL_OK")
</pallas_src>

<mosaic_0001>
module attributes {stable_mosaic.version = 11 : i64} {
  func.func @_gdice_kernel(%arg0: i32, %arg1: i32, %arg2: memref<1x4x2x128xf32, #tpu.memory_space<vmem>>, %arg3: memref<1x2x128xi32, #tpu.memory_space<vmem>>, %arg4: memref<1x1x128xf32, #tpu.memory_space<vmem>>, %arg5: memref<4x128xf32, #tpu.memory_space<vmem>>, %arg6: memref<4x128xf32, #tpu.memory_space<vmem>>, %arg7: memref<4x128xf32, #tpu.memory_space<vmem>>) attributes {dimension_semantics = [#tpu.dimension_semantics<parallel>, #tpu.dimension_semantics<arbitrary>], iteration_bounds = array<i64: 2, 1>, scalar_prefetch = 0 : i64, scratch_operands = 3 : i64, tpu.core_type = #tpu.core_type<tc>, window_params = [{transform_indices = @transform_0, window_bounds = array<i64: 1, 4, 2, 128>}, {transform_indices = @transform_1, window_bounds = array<i64: 1, 2, 128>}, {transform_indices = @transform_2, window_bounds = array<i64: 1, 1, 128>}]} {
    %c0_i32 = arith.constant 0 : i32
    %0 = arith.cmpi eq, %arg1, %c0_i32 : i32
    %1 = arith.extui %0 : i1 to i32
    %c0_i32_0 = arith.constant 0 : i32
    %2 = arith.cmpi ne, %1, %c0_i32_0 : i32
    scf.if %2 {
      %cst_72 = arith.constant 0.000000e+00 : f32
      %136 = vector.broadcast %cst_72 : f32 to vector<4x128xf32>
      %c0_73 = arith.constant 0 : index
      %c0_74 = arith.constant 0 : index
      %137 = vector.load %arg5[%c0_73, %c0_74] : memref<4x128xf32, #tpu.memory_space<vmem>>, vector<4x128xf32>
      tpu.vector_store %arg5[%c0_73, %c0_74], %136 {strides = array<i32>} : memref<4x128xf32, #tpu.memory_space<vmem>>, vector<4x128xf32>,
      %cst_75 = arith.constant 0.000000e+00 : f32
      %138 = vector.broadcast %cst_75 : f32 to vector<4x128xf32>
      %c0_76 = arith.constant 0 : index
      %c0_77 = arith.constant 0 : index
      %139 = vector.load %arg6[%c0_76, %c0_77] : memref<4x128xf32, #tpu.memory_space<vmem>>, vector<4x128xf32>
      tpu.vector_store %arg6[%c0_76, %c0_77], %138 {strides = array<i32>} : memref<4x128xf32, #tpu.memory_space<vmem>>, vector<4x128xf32>,
      %cst_78 = arith.constant 0.000000e+00 : f32
      %140 = vector.broadcast %cst_78 : f32 to vector<4x128xf32>
      %c0_79 = arith.constant 0 : index
      %c0_80 = arith.constant 0 : index
      %141 = vector.load %arg7[%c0_79, %c0_80] : memref<4x128xf32, #tpu.memory_space<vmem>>, vector<4x128xf32>
      tpu.vector_store %arg7[%c0_79, %c0_80], %140 {strides = array<i32>} : memref<4x128xf32, #tpu.memory_space<vmem>>, vector<4x128xf32>,
    } else {
    }
    %c0 = arith.constant 0 : index
    %c0_1 = arith.constant 0 : index
    %c0_2 = arith.constant 0 : index
    %c0_3 = arith.constant 0 : index
    %3 = vector.load %arg2[%c0, %c0_1, %c0_2, %c0_3] : memref<1x4x2x128xf32, #tpu.memory_space<vmem>>, vector<1x4x2x128xf32>
    %4 = vector.shape_cast %3 : vector<1x4x2x128xf32> to vector<4x2x128xf32>
    %c0_4 = arith.constant 0 : index
    %c0_5 = arith.constant 0 : index
    %c0_6 = arith.constant 0 : index
    %5 = vector.load %arg3[%c0_4, %c0_5, %c0_6] : memref<1x2x128xi32, #tpu.memory_space<vmem>>, vector<1x2x128xi32>
    %6 = vector.shape_cast %5 : vector<1x2x128xi32> to vector<2x128xi32>
    %cst = arith.constant dense<0xFF800000> : vector<2x128xf32>
    %7 = vector.multi_reduction <maximumf>, %4, %cst [0] : vector<4x2x128xf32> to vector<2x128xf32>
    %8 = vector.shape_cast %7 : vector<2x128xf32> to vector<1x2x128xf32>
    %9 = vector.broadcast %8 : vector<1x2x128xf32> to vector<4x2x128xf32>
    %10 = arith.subf %4, %9 : vector<4x2x128xf32>
    %11 = math.exp %10 : vector<4x2x128xf32>
    %cst_7 = arith.constant dense<0.000000e+00> : vector<2x128xf32>
    %12 = vector.multi_reduction <add>, %11, %cst_7 [0] : vector<4x2x128xf32> to vector<2x128xf32>
    %13 = tpu.reciprocal %12 {approx = true} : vector<2x128xf32> -> vector<2x128xf32>
    %14 = vector.shape_cast %13 : vector<2x128xf32> to vector<1x2x128xf32>
    %15 = vector.broadcast %14 : vector<1x2x128xf32> to vector<4x2x128xf32>
    %16 = arith.mulf %11, %15 : vector<4x2x128xf32>
    %c0_i32_8 = arith.constant 0 : i32
    %17 = vector.broadcast %c0_i32_8 : i32 to vector<2x128xi32>
    %18 = arith.cmpi eq, %6, %17 : vector<2x128xi32>
    %19 = vector.extract_strided_slice %16 {offsets = [0, 0, 0], sizes = [1, 2, 128], strides = [1, 1, 1]} : vector<4x2x128xf32> to vector<1x2x128xf32>
    %20 = vector.shape_cast %19 : vector<1x2x128xf32> to vector<2x128xf32>
    %c0_9 = arith.constant 0 : index
    %c0_10 = arith.constant 0 : index
    %21 = vector.load %arg5[%c0_9, %c0_10] : memref<4x128xf32, #tpu.memory_space<vmem>>, vector<1x128xf32>
    %22 = vector.shape_cast %21 : vector<1x128xf32> to vector<128xf32>
    %23 = arith.extui %18 : vector<2x128xi1> to vector<2x128xi32>
    %24 = arith.sitofp %23 : vector<2x128xi32> to vector<2x128xf32>
    %cst_11 = arith.constant dense<0.000000e+00> : vector<128xf32>
    %25 = vector.multi_reduction <add>, %24, %cst_11 [0] : vector<2x128xf32> to vector<128xf32>
    %26 = arith.addf %22, %25 : vector<128xf32>
    %c0_12 = arith.constant 0 : index
    %c0_13 = arith.constant 0 : index
    %27 = vector.load %arg5[%c0_12, %c0_13] : memref<4x128xf32, #tpu.memory_space<vmem>>, vector<1x128xf32>
    %28 = vector.shape_cast %27 : vector<1x128xf32> to vector<128xf32>
    %29 = vector.shape_cast %26 : vector<128xf32> to vector<1x128xf32>
    tpu.vector_store %arg5[%c0_12, %c0_13], %29 {strides = array<i32>} : memref<4x128xf32, #tpu.memory_space<vmem>>, vector<1x128xf32>,
    %c0_14 = arith.constant 0 : index
    %c0_15 = arith.constant 0 : index
    %30 = vector.load %arg6[%c0_14, %c0_15] : memref<4x128xf32, #tpu.memory_space<vmem>>, vector<1x128xf32>
    %31 = vector.shape_cast %30 : vector<1x128xf32> to vector<128xf32>
    %cst_16 = arith.constant dense<0.000000e+00> : vector<128xf32>
    %32 = vector.multi_reduction <add>, %20, %cst_16 [0] : vector<2x128xf32> to vector<128xf32>
    %33 = arith.addf %31, %32 : vector<128xf32>
    %c0_17 = arith.constant 0 : index
    %c0_18 = arith.constant 0 : index
    %34 = vector.load %arg6[%c0_17, %c0_18] : memref<4x128xf32, #tpu.memory_space<vmem>>, vector<1x128xf32>
    %35 = vector.shape_cast %34 : vector<1x128xf32> to vector<128xf32>
    %36 = vector.shape_cast %33 : vector<128xf32> to vector<1x128xf32>
    tpu.vector_store %arg6[%c0_17, %c0_18], %36 {strides = array<i32>} : memref<4x128xf32, #tpu.memory_space<vmem>>, vector<1x128xf32>,
    %c0_19 = arith.constant 0 : index
    %c0_20 = arith.constant 0 : index
    %37 = vector.load %arg7[%c0_19, %c0_20] : memref<4x128xf32, #tpu.memory_space<vmem>>, vector<1x128xf32>
    %38 = vector.shape_cast %37 : vector<1x128xf32> to vector<128xf32>
    %cst_21 = arith.constant 0.000000e+00 : f32
    %39 = vector.broadcast %cst_21 : f32 to vector<2x128xf32>
    %40 = arith.select %18, %20, %39 : vector<2x128xi1>, vector<2x128xf32>
    %cst_22 = arith.constant dense<0.000000e+00> : vector<128xf32>
    %41 = vector.multi_reduction <add>, %40, %cst_22 [0] : vector<2x128xf32> to vector<128xf32>
    %42 = arith.addf %38, %41 : vector<128xf32>
    %c0_23 = arith.constant 0 : index
    %c0_24 = arith.constant 0 : index
    %43 = vector.load %arg7[%c0_23, %c0_24] : memref<4x128xf32, #tpu.memory_space<vmem>>, vector<1x128xf32>
    %44 = vector.shape_cast %43 : vector<1x128xf32> to vector<128xf32>
    %45 = vector.shape_cast %42 : vector<128xf32> to vector<1x128xf32>
    tpu.vector_store %arg7[%c0_23, %c0_24], %45 {strides = array<i32>} : memref<4x128xf32, #tpu.memory_space<vmem>>, vector<1x128xf32>,
    %c1_i32 = arith.constant 1 : i32
    %46 = vector.broadcast %c1_i32 : i32 to vector<2x128xi32>
    %47 = arith.cmpi eq, %6, %46 : vector<2x128xi32>
    %48 = vector.extract_strided_slice %16 {offsets = [1, 0, 0], sizes = [1, 2, 128], strides = [1, 1, 1]} : vector<4x2x128xf32> to vector<1x2x128xf32>
    %49 = vector.shape_cast %48 : vector<1x2x128xf32> to vector<2x128xf32>
    %c1 = arith.constant 1 : index
    %c0_25 = arith.constant 0 : index
    %50 = vector.load %arg5[%c1, %c0_25] : memref<4x128xf32, #tpu.memory_space<vmem>>, vector<1x128xf32>
    %51 = vector.shape_cast %50 : vector<1x128xf32> to vector<128xf32>
    %52 = arith.extui %47 : vector<2x128xi1> to vector<2x128xi32>
    %53 = arith.sitofp %52 : vector<2x128xi32> to vector<2x128xf32>
    %cst_26 = arith.constant dense<0.000000e+00> : vector<128xf32>
    %54 = vector.multi_reduction <add>, %53, %cst_26 [0] : vector<2x128xf32> to vector<128xf32>
    %55 = arith.addf %51, %54 : vector<128xf32>
    %c1_27 = arith.constant 1 : index
    %c0_28 = arith.constant 0 : index
    %56 = vector.load %arg5[%c1_27, %c0_28] : memref<4x128xf32, #tpu.memory_space<vmem>>, vector<1x128xf32>
    %57 = vector.shape_cast %56 : vector<1x128xf32> to vector<128xf32>
    %58 = vector.shape_cast %55 : vector<128xf32> to vector<1x128xf32>
    tpu.vector_store %arg5[%c1_27, %c0_28], %58 {strides = array<i32>} : memref<4x128xf32, #tpu.memory_space<vmem>>, vector<1x128xf32>,
    %c1_29 = arith.constant 1 : index
    %c0_30 = arith.constant 0 : index
    %59 = vector.load %arg6[%c1_29, %c0_30] : memref<4x128xf32, #tpu.memory_space<vmem>>, vector<1x128xf32>
    %60 = vector.shape_cast %59 : vector<1x128xf32> to vector<128xf32>
    %cst_31 = arith.constant dense<0.000000e+00> : vector<128xf32>
    %61 = vector.multi_reduction <add>, %49, %cst_31 [0] : vector<2x128xf32> to vector<128xf32>
    %62 = arith.addf %60, %61 : vector<128xf32>
    %c1_32 = arith.constant 1 : index
    %c0_33 = arith.constant 0 : index
    %63 = vector.load %arg6[%c1_32, %c0_33] : memref<4x128xf32, #tpu.memory_space<vmem>>, vector<1x128xf32>
    %64 = vector.shape_cast %63 : vector<1x128xf32> to vector<128xf32>
    %65 = vector.shape_cast %62 : vector<128xf32> to vector<1x128xf32>
    tpu.vector_store %arg6[%c1_32, %c0_33], %65 {strides = array<i32>} : memref<4x128xf32, #tpu.memory_space<vmem>>, vector<1x128xf32>,
    %c1_34 = arith.constant 1 : index
    %c0_35 = arith.constant 0 : index
    %66 = vector.load %arg7[%c1_34, %c0_35] : memref<4x128xf32, #tpu.memory_space<vmem>>, vector<1x128xf32>
    %67 = vector.shape_cast %66 : vector<1x128xf32> to vector<128xf32>
    %cst_36 = arith.constant 0.000000e+00 : f32
    %68 = vector.broadcast %cst_36 : f32 to vector<2x128xf32>
    %69 = arith.select %47, %49, %68 : vector<2x128xi1>, vector<2x128xf32>
    %cst_37 = arith.constant dense<0.000000e+00> : vector<128xf32>
    %70 = vector.multi_reduction <add>, %69, %cst_37 [0] : vector<2x128xf32> to vector<128xf32>
    %71 = arith.addf %67, %70 : vector<128xf32>
    %c1_38 = arith.constant 1 : index
    %c0_39 = arith.constant 0 : index
    %72 = vector.load %arg7[%c1_38, %c0_39] : memref<4x128xf32, #tpu.memory_space<vmem>>, vector<1x128xf32>
    %73 = vector.shape_cast %72 : vector<1x128xf32> to vector<128xf32>
    %74 = vector.shape_cast %71 : vector<128xf32> to vector<1x128xf32>
    tpu.vector_store %arg7[%c1_38, %c0_39], %74 {strides = array<i32>} : memref<4x128xf32, #tpu.memory_space<vmem>>, vector<1x128xf32>,
    %c2_i32 = arith.constant 2 : i32
    %75 = vector.broadcast %c2_i32 : i32 to vector<2x128xi32>
    %76 = arith.cmpi eq, %6, %75 : vector<2x128xi32>
    %77 = vector.extract_strided_slice %16 {offsets = [2, 0, 0], sizes = [1, 2, 128], strides = [1, 1, 1]} : vector<4x2x128xf32> to vector<1x2x128xf32>
    %78 = vector.shape_cast %77 : vector<1x2x128xf32> to vector<2x128xf32>
    %c2 = arith.constant 2 : index
    %c0_40 = arith.constant 0 : index
    %79 = vector.load %arg5[%c2, %c0_40] : memref<4x128xf32, #tpu.memory_space<vmem>>, vector<1x128xf32>
    %80 = vector.shape_cast %79 : vector<1x128xf32> to vector<128xf32>
    %81 = arith.extui %76 : vector<2x128xi1> to vector<2x128xi32>
    %82 = arith.sitofp %81 : vector<2x128xi32> to vector<2x128xf32>
    %cst_41 = arith.constant dense<0.000000e+00> : vector<128xf32>
    %83 = vector.multi_reduction <add>, %82, %cst_41 [0] : vector<2x128xf32> to vector<128xf32>
    %84 = arith.addf %80, %83 : vector<128xf32>
    %c2_42 = arith.constant 2 : index
    %c0_43 = arith.constant 0 : index
    %85 = vector.load %arg5[%c2_42, %c0_43] : memref<4x128xf32, #tpu.memory_space<vmem>>, vector<1x128xf32>
    %86 = vector.shape_cast %85 : vector<1x128xf32> to vector<128xf32>
    %87 = vector.shape_cast %84 : vector<128xf32> to vector<1x128xf32>
    tpu.vector_store %arg5[%c2_42, %c0_43], %87 {strides = array<i32>} : memref<4x128xf32, #tpu.memory_space<vmem>>, vector<1x128xf32>,
    %c2_44 = arith.constant 2 : index
    %c0_45 = arith.constant 0 : index
    %88 = vector.load %arg6[%c2_44, %c0_45] : memref<4x128xf32, #tpu.memory_space<vmem>>, vector<1x128xf32>
    %89 = vector.shape_cast %88 : vector<1x128xf32> to vector<128xf32>
    %cst_46 = arith.constant dense<0.000000e+00> : vector<128xf32>
    %90 = vector.multi_reduction <add>, %78, %cst_46 [0] : vector<2x128xf32> to vector<128xf32>
    %91 = arith.addf %89, %90 : vector<128xf32>
    %c2_47 = arith.constant 2 : index
    %c0_48 = arith.constant 0 : index
    %92 = vector.load %arg6[%c2_47, %c0_48] : memref<4x128xf32, #tpu.memory_space<vmem>>, vector<1x128xf32>
    %93 = vector.shape_cast %92 : vector<1x128xf32> to vector<128xf32>
    %94 = vector.shape_cast %91 : vector<128xf32> to vector<1x128xf32>
    tpu.vector_store %arg6[%c2_47, %c0_48], %94 {strides = array<i32>} : memref<4x128xf32, #tpu.memory_space<vmem>>, vector<1x128xf32>,
    %c2_49 = arith.constant 2 : index
    %c0_50 = arith.constant 0 : index
    %95 = vector.load %arg7[%c2_49, %c0_50] : memref<4x128xf32, #tpu.memory_space<vmem>>, vector<1x128xf32>
    %96 = vector.shape_cast %95 : vector<1x128xf32> to vector<128xf32>
    %cst_51 = arith.constant 0.000000e+00 : f32
    %97 = vector.broadcast %cst_51 : f32 to vector<2x128xf32>
    %98 = arith.select %76, %78, %97 : vector<2x128xi1>, vector<2x128xf32>
    %cst_52 = arith.constant dense<0.000000e+00> : vector<128xf32>
    %99 = vector.multi_reduction <add>, %98, %cst_52 [0] : vector<2x128xf32> to vector<128xf32>
    %100 = arith.addf %96, %99 : vector<128xf32>
    %c2_53 = arith.constant 2 : index
    %c0_54 = arith.constant 0 : index
    %101 = vector.load %arg7[%c2_53, %c0_54] : memref<4x128xf32, #tpu.memory_space<vmem>>, vector<1x128xf32>
    %102 = vector.shape_cast %101 : vector<1x128xf32> to vector<128xf32>
    %103 = vector.shape_cast %100 : vector<128xf32> to vector<1x128xf32>
    tpu.vector_store %arg7[%c2_53, %c0_54], %103 {strides = array<i32>} : memref<4x128xf32, #tpu.memory_space<vmem>>, vector<1x128xf32>,
    %c3_i32 = arith.constant 3 : i32
    %104 = vector.broadcast %c3_i32 : i32 to vector<2x128xi32>
    %105 = arith.cmpi eq, %6, %104 : vector<2x128xi32>
    %106 = vector.extract_strided_slice %16 {offsets = [3, 0, 0], sizes = [1, 2, 128], strides = [1, 1, 1]} : vector<4x2x128xf32> to vector<1x2x128xf32>
    %107 = vector.shape_cast %106 : vector<1x2x128xf32> to vector<2x128xf32>
    %c3 = arith.constant 3 : index
    %c0_55 = arith.constant 0 : index
    %108 = vector.load %arg5[%c3, %c0_55] : memref<4x128xf32, #tpu.memory_space<vmem>>, vector<1x128xf32>
    %109 = vector.shape_cast %108 : vector<1x128xf32> to vector<128xf32>
    %110 = arith.extui %105 : vector<2x128xi1> to vector<2x128xi32>
    %111 = arith.sitofp %110 : vector<2x128xi32> to vector<2x128xf32>
    %cst_56 = arith.constant dense<0.000000e+00> : vector<128xf32>
    %112 = vector.multi_reduction <add>, %111, %cst_56 [0] : vector<2x128xf32> to vector<128xf32>
    %113 = arith.addf %109, %112 : vector<128xf32>
    %c3_57 = arith.constant 3 : index
    %c0_58 = arith.constant 0 : index
    %114 = vector.load %arg5[%c3_57, %c0_58] : memref<4x128xf32, #tpu.memory_space<vmem>>, vector<1x128xf32>
    %115 = vector.shape_cast %114 : vector<1x128xf32> to vector<128xf32>
    %116 = vector.shape_cast %113 : vector<128xf32> to vector<1x128xf32>
    tpu.vector_store %arg5[%c3_57, %c0_58], %116 {strides = array<i32>} : memref<4x128xf32, #tpu.memory_space<vmem>>, vector<1x128xf32>,
    %c3_59 = arith.constant 3 : index
    %c0_60 = arith.constant 0 : index
    %117 = vector.load %arg6[%c3_59, %c0_60] : memref<4x128xf32, #tpu.memory_space<vmem>>, vector<1x128xf32>
    %118 = vector.shape_cast %117 : vector<1x128xf32> to vector<128xf32>
    %cst_61 = arith.constant dense<0.000000e+00> : vector<128xf32>
    %119 = vector.multi_reduction <add>, %107, %cst_61 [0] : vector<2x128xf32> to vector<128xf32>
    %120 = arith.addf %118, %119 : vector<128xf32>
    %c3_62 = arith.constant 3 : index
    %c0_63 = arith.constant 0 : index
    %121 = vector.load %arg6[%c3_62, %c0_63] : memref<4x128xf32, #tpu.memory_space<vmem>>, vector<1x128xf32>
    %122 = vector.shape_cast %121 : vector<1x128xf32> to vector<128xf32>
    %123 = vector.shape_cast %120 : vector<128xf32> to vector<1x128xf32>
    tpu.vector_store %arg6[%c3_62, %c0_63], %123 {strides = array<i32>} : memref<4x128xf32, #tpu.memory_space<vmem>>, vector<1x128xf32>,
    %c3_64 = arith.constant 3 : index
    %c0_65 = arith.constant 0 : index
    %124 = vector.load %arg7[%c3_64, %c0_65] : memref<4x128xf32, #tpu.memory_space<vmem>>, vector<1x128xf32>
    %125 = vector.shape_cast %124 : vector<1x128xf32> to vector<128xf32>
    %cst_66 = arith.constant 0.000000e+00 : f32
    %126 = vector.broadcast %cst_66 : f32 to vector<2x128xf32>
    %127 = arith.select %105, %107, %126 : vector<2x128xi1>, vector<2x128xf32>
    %cst_67 = arith.constant dense<0.000000e+00> : vector<128xf32>
    %128 = vector.multi_reduction <add>, %127, %cst_67 [0] : vector<2x128xf32> to vector<128xf32>
    %129 = arith.addf %125, %128 : vector<128xf32>
    %c3_68 = arith.constant 3 : index
    %c0_69 = arith.constant 0 : index
    %130 = vector.load %arg7[%c3_68, %c0_69] : memref<4x128xf32, #tpu.memory_space<vmem>>, vector<1x128xf32>
    %131 = vector.shape_cast %130 : vector<1x128xf32> to vector<128xf32>
    %132 = vector.shape_cast %129 : vector<128xf32> to vector<1x128xf32>
    tpu.vector_store %arg7[%c3_68, %c0_69], %132 {strides = array<i32>} : memref<4x128xf32, #tpu.memory_space<vmem>>, vector<1x128xf32>,
    %c0_i32_70 = arith.constant 0 : i32
    %133 = arith.cmpi eq, %arg1, %c0_i32_70 : i32
    %134 = arith.extui %133 : i1 to i32
    %c0_i32_71 = arith.constant 0 : i32
    %135 = arith.cmpi ne, %134, %c0_i32_71 : i32
    scf.if %135 {
      %c0_72 = arith.constant 0 : index
      %c0_73 = arith.constant 0 : index
      %136 = vector.load %arg5[%c0_72, %c0_73] : memref<4x128xf32, #tpu.memory_space<vmem>>, vector<4x128xf32>
      %cst_74 = arith.constant dense<0.000000e+00> : vector<4xf32>
      %137 = vector.multi_reduction <add>, %136, %cst_74 [1] : vector<4x128xf32> to vector<4xf32>
      %138 = vector.shape_cast %137 : vector<4xf32> to vector<4x1xf32>
      %c0_75 = arith.constant 0 : index
      %c0_76 = arith.constant 0 : index
      %139 = vector.load %arg6[%c0_75, %c0_76] : memref<4x128xf32, #tpu.memory_space<vmem>>, vector<4x128xf32>
      %cst_77 = arith.constant dense<0.000000e+00> : vector<4xf32>
      %140 = vector.multi_reduction <add>, %139, %cst_77 [1] : vector<4x128xf32> to vector<4xf32>
      %141 = vector.shape_cast %140 : vector<4xf32> to vector<4x1xf32>
      %c0_78 = arith.constant 0 : index
      %c0_79 = arith.constant 0 : index
      %142 = vector.load %arg7[%c0_78, %c0_79] : memref<4x128xf32, #tpu.memory_space<vmem>>, vector<4x128xf32>
      %cst_80 = arith.constant dense<0.000000e+00> : vector<4xf32>
      %143 = vector.multi_reduction <add>, %142, %cst_80 [1] : vector<4x128xf32> to vector<4xf32>
      %144 = vector.shape_cast %143 : vector<4xf32> to vector<4x1xf32>
      %cst_81 = arith.constant 1.000000e-10 : f32
      %145 = vector.broadcast %cst_81 : f32 to vector<4x1xf32>
      %146 = arith.addf %138, %145 : vector<4x1xf32>
      %cst_82 = arith.constant 1.000000e-10 : f32
      %147 = vector.broadcast %cst_82 : f32 to vector<4x1xf32>
      %148 = arith.addf %138, %147 : vector<4x1xf32>
      %149 = arith.mulf %146, %148 : vector<4x1xf32>
      %cst_83 = arith.constant 1.000000e+00 : f32
      %150 = vector.broadcast %cst_83 : f32 to vector<4x1xf32>
      %151 = arith.divf %150, %149 : vector<4x1xf32>
      %152 = arith.mulf %151, %144 : vector<4x1xf32>
      %153 = vector.shape_cast %152 : vector<4x1xf32> to vector<1x4x1xf32>
      %cst_84 = arith.constant dense<0.000000e+00> : vector<1xf32>
      %154 = vector.multi_reduction <add>, %153, %cst_84 [1, 2] : vector<1x4x1xf32> to vector<1xf32>
      %155 = vector.shape_cast %154 : vector<1xf32> to vector<1x1x1xf32>
      %156 = vector.extract %155[0, 0, 0] : f32 from vector<1x1x1xf32>
      %157 = arith.addf %141, %138 : vector<4x1xf32>
      %158 = arith.mulf %151, %157 : vector<4x1xf32>
      %159 = vector.shape_cast %158 : vector<4x1xf32> to vector<1x4x1xf32>
      %cst_85 = arith.constant dense<0.000000e+00> : vector<1xf32>
      %160 = vector.multi_reduction <add>, %159, %cst_85 [1, 2] : vector<1x4x1xf32> to vector<1xf32>
      %161 = vector.shape_cast %160 : vector<1xf32> to vector<1x1x1xf32>
      %162 = vector.extract %161[0, 0, 0] : f32 from vector<1x1x1xf32>
      %cst_86 = arith.constant 9.99999974E-6 : f32
      %163 = arith.addf %156, %cst_86 : f32
      %cst_87 = arith.constant 2.000000e+00 : f32
      %164 = arith.mulf %cst_87, %163 : f32
      %cst_88 = arith.constant 9.99999974E-6 : f32
      %165 = arith.addf %162, %cst_88 : f32
      %166 = arith.divf %164, %165 : f32
      %cst_89 = arith.constant 1.000000e+00 : f32
      %167 = arith.subf %cst_89, %166 : f32
      %168 = vector.broadcast %167 : f32 to vector<1x128xf32>
      %c0_90 = arith.constant 0 : index
      %c0_91 = arith.constant 0 : index
      %c0_92 = arith.constant 0 : index
      %169 = vector.load %arg4[%c0_90, %c0_91, %c0_92] : memref<1x1x128xf32, #tpu.memory_space<vmem>>, vector<1x1x128xf32>
      %170 = vector.shape_cast %169 : vector<1x1x128xf32> to vector<1x128xf32>
      %171 = vector.shape_cast %168 : vector<1x128xf32> to vector<1x1x128xf32>
      tpu.vector_store %arg4[%c0_90, %c0_91, %c0_92], %171 {strides = array<i32>} : memref<1x1x128xf32, #tpu.memory_space<vmem>>, vector<1x1x128xf32>,
    } else {
    }
    return
  }
  func.func @transform_0(%arg0: i32, %arg1: i32) -> (i32, i32, i32, i32) {
    %c0_i32 = arith.constant 0 : i32
    %c0_i32_0 = arith.constant 0 : i32
    %c0_i32_1 = arith.constant 0 : i32
    return %arg0, %c0_i32, %arg1, %c0_i32_0 : i32, i32, i32, i32
  }
  func.func @transform_1(%arg0: i32, %arg1: i32) -> (i32, i32, i32) {
    %c0_i32 = arith.constant 0 : i32
    %c0_i32_0 = arith.constant 0 : i32
    return %arg0, %arg1, %c0_i32 : i32, i32, i32
  }
  func.func @transform_2(%arg0: i32, %arg1: i32) -> (i32, i32, i32) {
    %c0_i32 = arith.constant 0 : i32
    %c0_i32_0 = arith.constant 0 : i32
    %c0_i32_1 = arith.constant 0 : i32
    return %arg0, %c0_i32, %c0_i32_0 : i32, i32, i32
  }
}

</mosaic_0001>

<llo_original>
// kernel: tpu_custom_call.1
$region0: #{tpu_custom_call.1}
  #allocation0 [shape = 'u32[]', space=smem, size = 0x4, offset = 0x4, fixed_abs, tag = 'smem constant byte address 0x4 - core index']
  #allocation1 [shape = 'u32[144,128]{1,0:T(1,128)}', space=vmem, size = 0x12000, scoped, tag = 'internal scratch']
  #allocation2 [shape = 'f32[4,128]{1,0:T(4,128)}', space=vmem, size = 0x800, scoped, tag = 'scratch operand']
  #allocation3 [shape = 'f32[4,128]{1,0:T(4,128)}', space=vmem, size = 0x800, scoped, tag = 'scratch operand']
  #allocation4 [shape = 'f32[4,128]{1,0:T(4,128)}', space=vmem, size = 0x800, scoped, tag = 'scratch operand']
  %s0 = inlined_call_operand.hbm [shape: f32[2,4,2,128], index: 0, kind: input, shape index: {}]
  %s1 = inlined_call_operand.hbm [shape: s32[2,2,128], index: 1, kind: input, shape index: {}]
  %s2 = inlined_call_operand.hbm [shape: f32[2,1,128], index: 2, kind: output, shape index: {}]
  %s3 = sld [smem:[#allocation0]]
  $region57: #{tpu_custom_call.1} parent=0
    _
  %s5 = ssub.s32 1, %s3
  %s6 = scalar_select 0, %s5, %s3
  $region1: #{tpu_custom_call.1} parent=0
    #allocation5 [shape = 'u8[8192]{0}', space=vmem, size = 0x2000, scoped, tag = 'input window, operand 0']
    #allocation6 [shape = 's32[2]{0}', space=sflag, size = 0x8, scoped, tag = 'scoped memory for tpu_custom_call.1']
    #allocation7 [shape = 's32[2]{0}', space=sflag, size = 0x8, scoped, tag = 'scoped memory for tpu_custom_call.1']
    #allocation8 [shape = 'u8[2048]{0}', space=vmem, size = 0x800, scoped, tag = 'input window, operand 1']
    #allocation9 [shape = 's32[2]{0}', space=sflag, size = 0x8, scoped, tag = 'scoped memory for tpu_custom_call.1']
    #allocation10 [shape = 'u8[1024]{0}', space=vmem, size = 0x400, scoped, tag = 'output window, operand 0']
    %7 = vsyncpa [#allocation6], 0
    %s8 = scalar_lea.sflag [#allocation6], 1
    %9 = vsyncpa %s8, 0
    %10 = vsyncpa [#allocation9], 0
    %s11 = scalar_lea.sflag [#allocation9], 1
    %12 = vsyncpa %s11, 0
    %13 = vsyncpa [#allocation7], 0
    %s14 = scalar_lea.sflag [#allocation7], 1
    %15 = vsyncpa %s14, 0
    loop: start=0, step=1, limit=4
    $region2: #{tpu_custom_call.1} parent=1 // loop_pre_header
      _
    $region3: #{tpu_custom_call.1} parent=1 // loop_header
      %s17 = sphi 0, %s21
      %p18 = scmp.ge.s32.totalorder %s17, 4
      %s24 = sphi 0, %s36
      %s25 = sphi 0, %s32
      %s26 = sphi 0, %s24
      %s27 = sphi 0, %s25
      %s28 = sphi 0, %s26
      %s29 = sphi 0, %s27
      %s41 = sphi 0, %s43
      %s44 = sphi 0, %s41
      %s45 = sphi 0, %s44
      %s61 = sphi 0, %s45
      %s69 = sphi 0, %s71
      %s72 = sphi 0, %s69
      %s73 = sphi 0, %s72
      %s89 = sphi 0, %s73
      %s95 = sphi 0, %s97
      %s98 = sphi 0, %s95
      %s99 = sphi 0, %s98
      %s115 = sphi 0, %s99
    $region4: #{tpu_custom_call.1} parent=1 // loop_header_branch
      %20 = sbr.rel (%p18) target = $region8
    $region5: #{tpu_custom_call.1} parent=1 // loop_body
      %s22 = ssub.s32 %s17, 1
      %s23 = ssub.s32 %s17, 2
      %s30 = sadd.s32 1, %s25
      %p31 = scmp.ge.s32.totalorder %s30, 1
      %s32 = scalar_select %p31, 0, %s30
      %s33 = sadd.s32 1, %s24
      %s34 = scalar_select %p31, %s33, %s24
      %p35 = scmp.ge.s32.totalorder %s34, 2
      %s36 = scalar_select %p35, 0, %s34
      %s37 = ssub.s32 %s24, %s36
      %s38 = ssub.s32 %s25, %s32
      %s39 = sor.u32 %s37, %s38
      %p40 = scmp.eq.s32.totalorder %s39, 0
      %s42 = sadd.s32 %s41, 1
      %s43 = scalar_select %p40, %s41, %s42
      %p46 = pneg %p40
      %p47 = scmp.eq.s32.totalorder %s17, 1
      %p48 = por %p46, %p47
      %p49 = scmp.ne.s32.totalorder %s41, %s44
      %p50 = scmp.eq.s32.totalorder %s17, 0
      %p51 = por %p49, %p50
      %p52 = scmp.ne.s32.totalorder %s41, %s44
      %p53 = scmp.eq.s32.totalorder %s22, 1
      %p54 = por %p52, %p53
      %p55 = scmp.ne.s32.totalorder %s44, %s45
      %p56 = scmp.eq.s32.totalorder %s22, 0
      %p57 = por %p55, %p56
      %p58 = scmp.ne.s32.totalorder %s44, %s45
      %p59 = scmp.eq.s32.totalorder %s23, 1
      %p60 = por %p58, %p59
      %p62 = scmp.ne.s32.totalorder %s45, %s61
      %p63 = scmp.eq.s32.totalorder %s23, 0
      %p64 = por %p62, %p63
      %s65 = ssub.s32 %s24, %s36
      %s66 = ssub.s32 %s25, %s32
      %s67 = sor.u32 %s65, %s66
      %p68 = scmp.eq.s32.totalorder %s67, 0
      %s70 = sadd.s32 %s69, 1
      %s71 = scalar_select %p68, %s69, %s70
      %p74 = pneg %p68
      %p75 = scmp.eq.s32.totalorder %s17, 1
      %p76 = por %p74, %p75
      %p77 = scmp.ne.s32.totalorder %s69, %s72
      %p78 = scmp.eq.s32.totalorder %s17, 0
      %p79 = por %p77, %p78
      %p80 = scmp.ne.s32.totalorder %s69, %s72
      %p81 = scmp.eq.s32.totalorder %s22, 1
      %p82 = por %p80, %p81
      %p83 = scmp.ne.s32.totalorder %s72, %s73
      %p84 = scmp.eq.s32.totalorder %s22, 0
      %p85 = por %p83, %p84
      %p86 = scmp.ne.s32.totalorder %s72, %s73
      %p87 = scmp.eq.s32.totalorder %s23, 1
      %p88 = por %p86, %p87
      %p90 = scmp.ne.s32.totalorder %s73, %s89
      %p91 = scmp.eq.s32.totalorder %s23, 0
      %p92 = por %p90, %p91
      %s93 = ssub.s32 %s24, %s36
      %p94 = scmp.eq.s32.totalorder %s93, 0
      %s96 = sadd.s32 %s95, 1
      %s97 = scalar_select %p94, %s95, %s96
      %p100 = pneg %p94
      %p101 = scmp.eq.s32.totalorder %s17, 1
      %p102 = por %p100, %p101
      %p103 = scmp.ne.s32.totalorder %s95, %s98
      %p104 = scmp.eq.s32.totalorder %s17, 0
      %p105 = por %p103, %p104
      %p106 = scmp.ne.s32.totalorder %s95, %s98
      %p107 = scmp.eq.s32.totalorder %s22, 1
      %p108 = por %p106, %p107
      %p109 = scmp.ne.s32.totalorder %s98, %s99
      %p110 = scmp.eq.s32.totalorder %s22, 0
      %p111 = por %p109, %p110
      %p112 = scmp.ne.s32.totalorder %s98, %s99
      %p113 = scmp.eq.s32.totalorder %s23, 1
      %p114 = por %p112, %p113
      %p116 = scmp.ne.s32.totalorder %s99, %s115
      %p117 = scmp.eq.s32.totalorder %s23, 0
      %p118 = por %p116, %p117
      %p119 = scmp.le.s32.totalorder 1, %s17
      %p120 = scmp.lt.s32.totalorder %s17, 3
      %p121 = pnand %p119, %p120
      %p122 = pneg %p121
      // Predicated region
      $region9: #{tpu_custom_call.1} parent=5 // pred_check
        _
      $region10: #{tpu_custom_call.1} parent=5 // pred_check_branch
        %124 = sbr.rel (%p121) target = $region12
      $region11: #{tpu_custom_call.1} parent=5 // pred_region
        %s125 = ssub.s32 %s17, 1
      $region12: #{tpu_custom_call.1} parent=5 // pred_fallthru
        _
      %p126 = scmp.lt.s32.totalorder %s17, 2
      // Predicated region
      $region13: #{tpu_custom_call.1} parent=5 // pred_check
        %p127 = pneg %p126
      $region14: #{tpu_custom_call.1} parent=5 // pred_check_branch
        %129 = sbr.rel (%p127) target = $region16
      $region15: #{tpu_custom_call.1} parent=5 // pred_region
        // Predicated region
        $region17: #{tpu_custom_call.1} parent=15 // pred_check
          %p130 = pneg %p51
        $region18: #{tpu_custom_call.1} parent=15 // pred_check_branch
          %132 = sbr.rel (%p130) target = $region20
        $region19: #{tpu_custom_call.1} parent=15 // pred_region
          %s133 = sand.u32 %s41, 1
          %s134 = scalar_lea.sflag [#allocation6], %s133
          %s135 = sand.u32 %s41, 1
          %s136 = smul.addr %s135, 8
          %s137 = scalar_lea.vmem [#allocation5], %s136
          %s139 = ssub.s32 128, 128
          %140 = vsyncadd %s134, %s139
          %s141 = smul.addr %s24, 4
          %s142 = sadd.s32 %s25, %s141
          %s143 = smul.addr %s142, 32
          %s144 = scalar_lea.hbm %s0, %s143
          %s145 = sshll.u32 %s137, 4
          %s146 = int_to_ptr.vmem [resolvable:$true] %s145
          %151 = dma.hbm_to_vmem [thread:$0]  %s144, 128, %s146, %s134, 32, 32, 2
        $region20: #{tpu_custom_call.1} parent=15 // pred_fallthru
          _
        // Predicated region
        $region21: #{tpu_custom_call.1} parent=15 // pred_check
          %p152 = pneg %p79
        $region22: #{tpu_custom_call.1} parent=15 // pred_check_branch
          %154 = sbr.rel (%p152) target = $region24
        $region23: #{tpu_custom_call.1} parent=15 // pred_region
          %s155 = sand.u32 %s69, 1
          %s156 = scalar_lea.sflag [#allocation9], %s155
          %s157 = sand.u32 %s69, 1
          %s158 = smul.addr %s157, 2
          %s159 = scalar_lea.vmem [#allocation8], %s158
          %s161 = ssub.s32 32, 32
          %162 = vsyncadd %s156, %s161
          %s163 = sadd.s32 %s25, %s24
          %s164 = smul.addr %s163, 32
          %s165 = scalar_lea.hbm %s1, %s164
          %s167 = sshll.u32 %s159, 4
          %s168 = int_to_ptr.vmem [resolvable:$true] %s167
          %170 = dma.hbm_to_vmem [thread:$0]  %s165, 32, %s168, %s156
        $region24: #{tpu_custom_call.1} parent=15 // pred_fallthru
          _
      $region16: #{tpu_custom_call.1} parent=5 // pred_fallthru
        _
      %p171 = scmp.le.s32.totalorder 1, %s17
      %p172 = scmp.lt.s32.totalorder %s17, 3
      %p173 = pnand %p171, %p172
      %p174 = pneg %p173
      // Predicated region
      $region25: #{tpu_custom_call.1} parent=5 // pred_check
        _
      $region26: #{tpu_custom_call.1} parent=5 // pred_check_branch
        %176 = sbr.rel (%p173) target = $region28
      $region27: #{tpu_custom_call.1} parent=5 // pred_region
        %s177 = ssub.s32 %s17, 1
        %s178 = sand.u32 %s44, 1
        %s179 = scalar_lea.sflag [#allocation6], %s178
        %s180 = sand.u32 %s44, 1
        %s181 = smul.addr %s180, 8
        %s182 = scalar_lea.vmem [#allocation5], %s181
        // Predicated region
        $region29: #{tpu_custom_call.1} parent=27 // pred_check
          %p183 = pneg %p57
        $region30: #{tpu_custom_call.1} parent=27 // pred_check_branch
          %185 = sbr.rel (%p183) target = $region32
        $region31: #{tpu_custom_call.1} parent=27 // pred_region
          %186 = dma.done %s179, 128
        $region32: #{tpu_custom_call.1} parent=27 // pred_fallthru
          _
        %s187 = sand.u32 %s72, 1
        %s188 = scalar_lea.sflag [#allocation9], %s187
        %s189 = sand.u32 %s72, 1
        %s190 = smul.addr %s189, 2
        %s191 = scalar_lea.vmem [#allocation8], %s190
        // Predicated region
        $region33: #{tpu_custom_call.1} parent=27 // pred_check
          %p192 = pneg %p85
        $region34: #{tpu_custom_call.1} parent=27 // pred_check_branch
          %194 = sbr.rel (%p192) target = $region36
        $region35: #{tpu_custom_call.1} parent=27 // pred_region
          %195 = dma.done %s188, 32
        $region36: #{tpu_custom_call.1} parent=27 // pred_fallthru
          _
        %s196 = sand.u32 %s44, 1
        %s197 = scalar_lea.sflag [#allocation6], %s196
        %s198 = sand.u32 %s44, 1
        %s199 = smul.addr %s198, 8
        %s200 = scalar_lea.vmem [#allocation5], %s199
        %p201 = pneg %p57
        %p202 = pneg %p54
        %s203 = sand.u32 %s72, 1
        %s204 = scalar_lea.sflag [#allocation9], %s203
        %s205 = sand.u32 %s72, 1
        %s206 = smul.addr %s205, 2
        %s207 = scalar_lea.vmem [#allocation8], %s206
        %p208 = pneg %p85
        %p209 = pneg %p82
        %p210 = pneg %p111
        %p211 = pneg %p108
        %s212 = sand.u32 %s98, 1
        %s213 = scalar_lea.sflag [#allocation7], %s212
        %s214 = sand.u32 %s98, 1
        %s215 = scalar_lea.vmem [#allocation10], %s214
        %p216 = scmp.eq.s32.totalorder %s27, 0
        // Predicated region
        $region37: #{tpu_custom_call.1} parent=27 // pred_check
          %p217 = pneg %p216
        $region38: #{tpu_custom_call.1} parent=27 // pred_check_branch
          %219 = sbr.rel (%p217) target = $region40
        $region39: #{tpu_custom_call.1} parent=27 // pred_region
          %220 = vst [vmem:[#allocation2] sm:$0xf] 0.0
          %221 = vst [vmem:[#allocation3] sm:$0xf] 0.0
          %222 = vst [vmem:[#allocation4] sm:$0xf] 0.0
        $region40: #{tpu_custom_call.1} parent=27 // pred_fallthru
          _
        %v223 = vld [vmem:[%s182] sm:$0x3]
        %v224 = vld [vmem:[%s182 + $0x2] sm:$0x3]
        %v225 = vld [vmem:[%s182 + $0x4] sm:$0x3]
        %v226 = vld [vmem:[%s182 + $0x6] sm:$0x3]
        %v227 = vld [vmem:[%s191] sm:$0x3]
        %vm228 = vcmask 1041408
        %v229 = vsel %vm228, %v223, -inf
        %v230 = vsel %vm228, %v224, -inf
        %v231 = vsel %vm228, %v225, -inf
        %v232 = vsel %vm228, %v226, -inf
        %v233 = vmax.f32 %v229, %v230
        %v234 = vmax.f32 %v231, %v232
        %v235 = vmax.f32 %v233, %v234
        %v236 = vsub.f32 %v223, %v235
        %v237 = vsub.f32 %v224, %v235
        %v238 = vsub.f32 %v225, %v235
        %v239 = vsub.f32 %v226, %v235
        %v240 = vmul.f32 %v236, 1.442695
        %v241 = vpow.pop %v240
        %v242 = vmul.f32 %v237, 1.442695
        %v243 = vpow.pop %v242
        %v244 = vmul.f32 %v238, 1.442695
        %v245 = vpow.pop %v244
        %v246 = vmul.f32 %v239, 1.442695
        %v247 = vpow.pop %v246
        %v248 = vsel %vm228, %v241, 0.0
        %v249 = vsel %vm228, %v243, 0.0
        %v250 = vadd.f32 %v248, %v249
        %v251 = vsel %vm228, %v245, 0.0
        %v252 = vadd.f32 %v250, %v251
        %v253 = vsel %vm228, %v247, 0.0
        %v254 = vadd.f32 %v252, %v253
        %v255 = vrcp.pop %v254
        %v256 = vmul.f32 %v241, %v255
        %v257 = vmul.f32 %v243, %v255
        %v258 = vmul.f32 %v245, %v255
        %v259 = vmul.f32 %v247, %v255
        %vm260 = vcmp.eq.s32.totalorder %v227, 0
        %v261 = vld [vmem:[#allocation2] sm:$0x1]
        %v262 = vsel %vm260, 1, 0
        %v263 = vcvt.s32.f32 %v262
        %v264 = vsel %vm228, %v263, 0.0
        %v265 = vrot.slane %v264, 4
        %v266 = vadd.f32 %v264, %v265
        %v267 = vrot.slane %v266, 2
        %v268 = vadd.f32 %v266, %v267
        %v269 = vrot.slane %v268, 1
        %v270 = vadd.f32 %v268, %v269
        %v271 = vadd.f32 %v261, %v270
        %272 = vst [vmem:[#allocation2] sm:$0x1] %v271
        %v273 = vld [vmem:[#allocation3] sm:$0x1]
        %v274 = vsel %vm228, %v256, 0.0
        %v275 = vrot.slane %v274, 4
        %v276 = vadd.f32 %v274, %v275
        %v277 = vrot.slane %v276, 2
        %v278 = vadd.f32 %v276, %v277
        %v279 = vrot.slane %v278, 1
        %v280 = vadd.f32 %v278, %v279
        %v281 = vadd.f32 %v273, %v280
        %282 = vst [vmem:[#allocation3] sm:$0x1] %v281
        %v283 = vld [vmem:[#allocation4] sm:$0x1]
        %v284 = vsel %vm260, %v256, 0.0
        %v285 = vsel %vm228, %v284, 0.0
        %v286 = vrot.slane %v285, 4
        %v287 = vadd.f32 %v285, %v286
        %v288 = vrot.slane %v287, 2
        %v289 = vadd.f32 %v287, %v288
        %v290 = vrot.slane %v289, 1
        %v291 = vadd.f32 %v289, %v290
        %v292 = vadd.f32 %v283, %v291
        %293 = vst [vmem:[#allocation4] sm:$0x1] %v292
        %vm294 = vcmp.eq.s32.totalorder %v227, 1
        %v295 = vld [vmem:[#allocation2 + $0x1] sm:$0x1]
        %v296 = vsel %vm294, 1, 0
        %v297 = vcvt.s32.f32 %v296
        %v298 = vsel %vm228, %v297, 0.0
        %v299 = vrot.slane %v298, 4
        %v300 = vadd.f32 %v298, %v299
        %v301 = vrot.slane %v300, 2
        %v302 = vadd.f32 %v300, %v301
        %v303 = vrot.slane %v302, 1
        %v304 = vadd.f32 %v302, %v303
        %v305 = vadd.f32 %v295, %v304
        %306 = vst [vmem:[#allocation2 + $0x1] sm:$0x1] %v305
        %v307 = vld [vmem:[#allocation3 + $0x1] sm:$0x1]
        %v308 = vsel %vm228, %v257, 0.0
        %v309 = vrot.slane %v308, 4
        %v310 = vadd.f32 %v308, %v309
        %v311 = vrot.slane %v310, 2
        %v312 = vadd.f32 %v310, %v311
        %v313 = vrot.slane %v312, 1
        %v314 = vadd.f32 %v312, %v313
        %v315 = vadd.f32 %v307, %v314
        %316 = vst [vmem:[#allocation3 + $0x1] sm:$0x1] %v315
        %v317 = vld [vmem:[#allocation4 + $0x1] sm:$0x1]
        %v318 = vsel %vm294, %v257, 0.0
        %v319 = vsel %vm228, %v318, 0.0
        %v320 = vrot.slane %v319, 4
        %v321 = vadd.f32 %v319, %v320
        %v322 = vrot.slane %v321, 2
        %v323 = vadd.f32 %v321, %v322
        %v324 = vrot.slane %v323, 1
        %v325 = vadd.f32 %v323, %v324
        %v326 = vadd.f32 %v317, %v325
        %327 = vst [vmem:[#allocation4 + $0x1] sm:$0x1] %v326
        %vm328 = vcmp.eq.s32.totalorder %v227, 2
        %v329 = vld [vmem:[#allocation2 + $0x2] sm:$0x1]
        %v330 = vsel %vm328, 1, 0
        %v331 = vcvt.s32.f32 %v330
        %v332 = vsel %vm228, %v331, 0.0
        %v333 = vrot.slane %v332, 4
        %v334 = vadd.f32 %v332, %v333
        %v335 = vrot.slane %v334, 2
        %v336 = vadd.f32 %v334, %v335
        %v337 = vrot.slane %v336, 1
        %v338 = vadd.f32 %v336, %v337
        %v339 = vadd.f32 %v329, %v338
        %340 = vst [vmem:[#allocation2 + $0x2] sm:$0x1] %v339
        %v341 = vld [vmem:[#allocation3 + $0x2] sm:$0x1]
        %v342 = vsel %vm228, %v258, 0.0
        %v343 = vrot.slane %v342, 4
        %v344 = vadd.f32 %v342, %v343
        %v345 = vrot.slane %v344, 2
        %v346 = vadd.f32 %v344, %v345
        %v347 = vrot.slane %v346, 1
        %v348 = vadd.f32 %v346, %v347
        %v349 = vadd.f32 %v341, %v348
        %350 = vst [vmem:[#allocation3 + $0x2] sm:$0x1] %v349
        %v351 = vld [vmem:[#allocation4 + $0x2] sm:$0x1]
        %v352 = vsel %vm328, %v258, 0.0
        %v353 = vsel %vm228, %v352, 0.0
        %v354 = vrot.slane %v353, 4
        %v355 = vadd.f32 %v353, %v354
        %v356 = vrot.slane %v355, 2
        %v357 = vadd.f32 %v355, %v356
        %v358 = vrot.slane %v357, 1
        %v359 = vadd.f32 %v357, %v358
        %v360 = vadd.f32 %v351, %v359
        %361 = vst [vmem:[#allocation4 + $0x2] sm:$0x1] %v360
        %vm362 = vcmp.eq.s32.totalorder %v227, 3
        %v363 = vld [vmem:[#allocation2 + $0x3] sm:$0x1]
        %v364 = vsel %vm362, 1, 0
        %v365 = vcvt.s32.f32 %v364
        %v366 = vsel %vm228, %v365, 0.0
        %v367 = vrot.slane %v366, 4
        %v368 = vadd.f32 %v366, %v367
        %v369 = vrot.slane %v368, 2
        %v370 = vadd.f32 %v368, %v369
        %v371 = vrot.slane %v370, 1
        %v372 = vadd.f32 %v370, %v371
        %v373 = vadd.f32 %v363, %v372
        %374 = vst [vmem:[#allocation2 + $0x3] sm:$0x1] %v373
        %v375 = vld [vmem:[#allocation3 + $0x3] sm:$0x1]
        %v376 = vsel %vm228, %v259, 0.0
        %v377 = vrot.slane %v376, 4
        %v378 = vadd.f32 %v376, %v377
        %v379 = vrot.slane %v378, 2
        %v380 = vadd.f32 %v378, %v379
        %v381 = vrot.slane %v380, 1
        %v382 = vadd.f32 %v380, %v381
        %v383 = vadd.f32 %v375, %v382
        %384 = vst [vmem:[#allocation3 + $0x3] sm:$0x1] %v383
        %v385 = vld [vmem:[#allocation4 + $0x3] sm:$0x1]
        %v386 = vsel %vm362, %v259, 0.0
        %v387 = vsel %vm228, %v386, 0.0
        %v388 = vrot.slane %v387, 4
        %v389 = vadd.f32 %v387, %v388
        %v390 = vrot.slane %v389, 2
        %v391 = vadd.f32 %v389, %v390
        %v392 = vrot.slane %v391, 1
        %v393 = vadd.f32 %v391, %v392
        %v394 = vadd.f32 %v385, %v393
        %395 = vst [vmem:[#allocation4 + $0x3] sm:$0x1] %v394
        // Predicated region
        $region41: #{tpu_custom_call.1} parent=27 // pred_check
          %p396 = pneg %p216
        $region42: #{tpu_custom_call.1} parent=27 // pred_check_branch
          %398 = sbr.rel (%p396) target = $region44
        $region43: #{tpu_custom_call.1} parent=27 // pred_region
          %v399 = vld [vmem:[#allocation2] sm:$0xf]
          %vm400 = vcmask 1043456
          %v401 = vsel %vm400, %v399, 0.0
          %402 = vadd.xlane.f32.xlu0 %v401
          %v403 = vpop.xlane.xlu0 %402
          %v404 = vld [vmem:[#allocation3] sm:$0xf]
          %v405 = vsel %vm400, %v404, 0.0
          %406 = vadd.xlane.f32.xlu0 %v405
          %v407 = vpop.xlane.xlu0 %406
          %v408 = vld [vmem:[#allocation4] sm:$0xf]
          %v409 = vsel %vm400, %v408, 0.0
          %410 = vadd.xlane.f32.xlu0 %v409
          %v411 = vpop.xlane.xlu0 %410
          %v412 = vadd.f32 %v403, 1e-10
          %v413 = vmul.f32 %v412, %v412
          %v414 = vrcp.pop %v413
          %v415 = vmul.f32 1.0, %v414
          %v416 = vmul.f32 %v415, %v411
          %vm417 = vcmask 3072
          %v418 = vsel %vm417, %v416, 0.0
          %419 = vadd.xlane.f32.xlu0 %v418
          %v420 = vpop.xlane.xlu0 %419
          %v421 = vrot.slane %v420, 4
          %v422 = vadd.f32 %v420, %v421
          %v423 = vrot.slane %v422, 2
          %v424 = vadd.f32 %v422, %v423
          %v425 = vrot.slane %v424, 1
          %v426 = vadd.f32 %v424, %v425
          %s427 = vtos %v426
          %v428 = vadd.f32 %v407, %v403
          %v429 = vmul.f32 %v415, %v428
          %v430 = vsel %vm417, %v429, 0.0
          %431 = vadd.xlane.f32.xlu0 %v430
          %v432 = vpop.xlane.xlu0 %431
          %v433 = vrot.slane %v432, 4
          %v434 = vadd.f32 %v432, %v433
          %v435 = vrot.slane %v434, 2
          %v436 = vadd.f32 %v434, %v435
          %v437 = vrot.slane %v436, 1
          %v438 = vadd.f32 %v436, %v437
          %s439 = vtos %v438
          %s440 = sadd.f32 %s427, 1e-05
          %s441 = smul.f32 %s440, 2.0
          %s442 = sadd.f32 %s439, 1e-05
          %v443 = vstv %s442
          %v444 = vrcp.pop %v443
          %s445 = vtos %v444
          %s446 = smul.f32 %s441, %s445
          %s447 = ssub.f32 1.0, %s446
          %v448 = vstv %s447
          %449 = vst [vmem:[%s215] sm:$0x1] %v448
        $region44: #{tpu_custom_call.1} parent=27 // pred_fallthru
          _
        %s450 = sand.u32 %s98, 1
        %s451 = scalar_lea.sflag [#allocation7], %s450
        %s452 = sand.u32 %s98, 1
        %s453 = scalar_lea.vmem [#allocation10], %s452
        // Predicated region
        $region45: #{tpu_custom_call.1} parent=27 // pred_check
          %p454 = pneg %p108
        $region46: #{tpu_custom_call.1} parent=27 // pred_check_branch
          %456 = sbr.rel (%p454) target = $region48
        $region47: #{tpu_custom_call.1} parent=27 // pred_region
          %s458 = ssub.s32 16, 16
          %459 = vsyncadd %s451, %s458
          %s460 = smul.addr %s26, 16
          %s461 = scalar_lea.hbm %s2, %s460
          %s463 = sshll.u32 %s453, 4
          %s464 = int_to_ptr.vmem [resolvable:$true] %s463
          %466 = dma.vmem_to_hbm [thread:$0]  %s464, 16, %s461, %s451
        $region48: #{tpu_custom_call.1} parent=27 // pred_fallthru
          _
      $region28: #{tpu_custom_call.1} parent=5 // pred_fallthru
        _
      %p467 = scmp.le.s32.totalorder 2, %s17
      // Predicated region
      $region49: #{tpu_custom_call.1} parent=5 // pred_check
        %p468 = pneg %p467
      $region50: #{tpu_custom_call.1} parent=5 // pred_check_branch
        %470 = sbr.rel (%p468) target = $region52
      $region51: #{tpu_custom_call.1} parent=5 // pred_region
        %s471 = ssub.s32 %s17, 2
        // Predicated region
        $region53: #{tpu_custom_call.1} parent=51 // pred_check
          %p472 = pneg %p114
        $region54: #{tpu_custom_call.1} parent=51 // pred_check_branch
          %474 = sbr.rel (%p472) target = $region56
        $region55: #{tpu_custom_call.1} parent=51 // pred_region
          %s475 = sand.u32 %s99, 1
          %s476 = scalar_lea.sflag [#allocation7], %s475
          %s477 = sand.u32 %s99, 1
          %s478 = scalar_lea.vmem [#allocation10], %s477
          %479 = dma.done %s476, 16
        $region56: #{tpu_custom_call.1} parent=51 // pred_fallthru
          _
      $region52: #{tpu_custom_call.1} parent=5 // pred_fallthru
        _
    $region6: #{tpu_custom_call.1} parent=1 // loop_footer
      %s21 = sadd.s32 1, %s17
    $region7: #{tpu_custom_call.1} parent=1 // loop_footer_branch
      %16 = sbr.rel target = $region3
    $region8: #{tpu_custom_call.1} parent=1 // loop_exit
      _
    %480 = vsyncpa [#allocation6], 1
    %s481 = scalar_lea.sflag [#allocation6], 1
    %482 = vsyncpa %s481, 1
    %483 = vsyncpa [#allocation9], 1
    %s484 = scalar_lea.sflag [#allocation9], 1
    %485 = vsyncpa %s484, 1
    %486 = vsyncpa [#allocation7], 1
    %s487 = scalar_lea.sflag [#allocation7], 1
    %488 = vsyncpa %s487, 1

</llo_original>
